<compile_context>
chip_gen: v6e
topology: v6e:2x2x1
jax: 0.10.0
libtpu: 0.0.40
codegen_flags: <defaults>
</compile_context>

<pallas_src>
import jax
import jax.numpy as jnp
from jax.experimental import pallas as pl
from jax.experimental.pallas import tpu as pltpu


def _round_up(x, m):
    return (x + m - 1) // m * m


def _tree_sum(rows):
    # Pairwise add to shorten the serial dependency chain of the gather sum.
    while len(rows) > 1:
        nxt = [rows[i] + rows[i + 1] for i in range(0, len(rows) - 1, 2)]
        if len(rows) % 2:
            nxt.append(rows[-1])
        rows = nxt
    return rows[0]


def cbow_kernel(idx_ref, emb_ref, w1_ref, b1_ref, w2_ref, b2_ref, out_ref,
                emb_acc):
    V = emb_ref.shape[0]              # true (un-padded) vocabulary size, static
    tile_b = emb_acc.shape[0]         # windows per grid step, static
    C = idx_ref.shape[1]              # context window size, static
    base = pl.program_id(0) * tile_b  # first window of this tile

    # --- embedding gather + sum (f32 VPU adds; indices read from SMEM) ---
    for b in range(tile_b):           # static unroll over the tile
        rows = [emb_ref[pl.ds(idx_ref[base + b, c], 1), :] for c in range(C)]
        emb_acc[pl.ds(b, 1), :] = _tree_sum(rows)          # (1, Dp) f32

    # --- linear1 + ReLU (bf16 MXU inputs if weights pre-cast; f32 acc) ---
    e = emb_acc[...].astype(w1_ref.dtype)                   # (tile_b, Dp)
    h = jnp.dot(e, w1_ref[...],
                preferred_element_type=jnp.float32) + b1_ref[...]
    h = jnp.maximum(h, 0.0)                                  # (tile_b, H) f32

    # --- linear2 over the lane-dense padded vocab dim ---
    logits = jnp.dot(h.astype(w2_ref.dtype), w2_ref[...],
                     preferred_element_type=jnp.float32) + b2_ref[...]

    # --- LogSoftmax over the first V lanes only (padded lanes masked) ---
    col = jax.lax.broadcasted_iota(jnp.int32, logits.shape, 1)
    masked = jnp.where(col < V, logits, jnp.float32(-1e30))
    m = jnp.max(masked, axis=-1, keepdims=True)
    z = masked - m                                # padded lanes -> exp() == 0
    lse = jnp.log(jnp.sum(jnp.exp(z), axis=-1, keepdims=True))
    out_ref[...] = z - lse


def prepare_cbow_params(emb, w1, b1, w2, b2, *, matmul_dtype=jnp.bfloat16):
    """One-time parameter plumbing (NOT in the per-call path).

    Pads D and V to lane-dense multiples of 128 and casts the matmul weights
    to `matmul_dtype` (bf16 recommended on v6e/v7x, f32 for exact numerics).
    Embedding rows stay f32 so the gather/sum is f32 on every chip generation.
    """
    V, D = emb.shape
    Dp = _round_up(D, 128)
    Vp = _round_up(V, 128)
    emb_p = jnp.pad(emb, ((0, 0), (0, Dp - D))).astype(jnp.float32)
    w1_p = jnp.pad(w1, ((0, Dp - D), (0, 0))).astype(matmul_dtype)
    w2_p = jnp.pad(w2, ((0, 0), (0, Vp - V))).astype(matmul_dtype)
    b1_p = b1.astype(jnp.float32)
    b2_p = jnp.pad(b2, ((0, 0), (0, Vp - V))).astype(jnp.float32)
    return (emb_p, w1_p, b1_p, w2_p, b2_p), V


def cbow_forward_batched(indices, params, vocab_size, *, tile_b=8):
    """indices: (B, C) int32 context word ids.  Returns (B, V) log-probs."""
    emb, w1, b1, w2, b2 = params
    if indices.dtype != jnp.int32:           # no-op when caller passes int32
        indices = indices.astype(jnp.int32)
    B, _ = indices.shape
    Bp = _round_up(B, tile_b)
    if Bp != B:                               # pad batch to a whole tile
        indices = jnp.pad(indices, ((0, Bp - B), (0, 0)))
    Vemb, Dp = emb.shape
    H = w1.shape[1]
    Vp = w2.shape[1]
    n_tiles = Bp // tile_b

    out = pl.pallas_call(
        cbow_kernel,
        out_shape=jax.ShapeDtypeStruct((Bp, Vp), jnp.float32),
        grid_spec=pltpu.PrefetchScalarGridSpec(
            num_scalar_prefetch=1,            # (Bp, C) indices land in SMEM
            grid=(n_tiles,),
            in_specs=[
                pl.BlockSpec((Vemb, Dp), lambda i, idx: (0, 0)),  # emb (resident)
                pl.BlockSpec((Dp, H), lambda i, idx: (0, 0)),     # w1
                pl.BlockSpec((1, H), lambda i, idx: (0, 0)),      # b1
                pl.BlockSpec((H, Vp), lambda i, idx: (0, 0)),     # w2
                pl.BlockSpec((1, Vp), lambda i, idx: (0, 0)),     # b2
            ],
            out_specs=pl.BlockSpec((tile_b, Vp), lambda i, idx: (i, 0)),
            scratch_shapes=[pltpu.VMEM((tile_b, Dp), jnp.float32)],
        ),
        compiler_params=pltpu.CompilerParams(
            dimension_semantics=("parallel",),   # shard window tiles across TCs
        ),
    )(indices, emb, w1, b1, w2, b2)
    # Consumers that can ignore padded lanes may skip this slice.
    return out[:B, :vocab_size]


def cbow_forward(indices, params, vocab_size):
    """Module-equivalent forward: (C,) indices -> (1, V) log-probs."""
    return cbow_forward_batched(indices[None, :], params, vocab_size, tile_b=8)


def reference_forward(indices_bc, emb, w1, b1, w2, b2):
    e = emb[indices_bc].sum(axis=1)              # (B, D)
    h = jnp.maximum(e @ w1 + b1, 0.0)
    logits = h @ w2 + b2
    return jax.nn.log_softmax(logits, axis=-1)


if __name__ == "__main__":
    # Reproduce the module's vocabulary size from the same text.
    text = ('People who truly loved once are far more likely to love again.\n'
            'Difficult circumstances serve as a textbook of life for people.\n'
            'The best preparation for tomorrow is doing your best today.\n'
            'The reason why a great man is great is that he resolves to be a great man.\n'
            'The shortest way to do many things is to only one thing at a time.\n'
            'Only they who fulfill their duties in everyday matters will fulfill them on great occasions. \n'
            'I go all out to deal with the ordinary life. \n'
            'I can stand up once again on my own.\n'
            'Never underestimate your power to change yourself.').split()
    word_size = len(set(text))          # vocabulary size V
    embedding_dim = 64                  # D
    hidden = 128
    context_size = 4                    # CBOW context window (2 before + 2 after)

    key = jax.random.PRNGKey(0)
    k_emb, k_w1, k_b1, k_w2, k_b2, k_in = jax.random.split(key, 6)

    # Deterministic parameter init mirroring PyTorch defaults:
    #   nn.Embedding ~ N(0, 1); nn.Linear ~ U(-1/sqrt(fan_in), 1/sqrt(fan_in)).
    emb = jax.random.normal(k_emb, (word_size, embedding_dim), jnp.float32)
    lim1 = 1.0 / jnp.sqrt(embedding_dim)
    w1 = jax.random.uniform(k_w1, (embedding_dim, hidden), jnp.float32, -lim1, lim1)
    b1 = jax.random.uniform(k_b1, (1, hidden), jnp.float32, -lim1, lim1)
    lim2 = 1.0 / jnp.sqrt(hidden)
    w2 = jax.random.uniform(k_w2, (hidden, word_size), jnp.float32, -lim2, lim2)
    b2 = jax.random.uniform(k_b2, (1, word_size), jnp.float32, -lim2, lim2)

    # 1) Exact module semantics: one context window, f32 matmuls.
    params_f32, V = prepare_cbow_params(emb, w1, b1, w2, b2,
                                        matmul_dtype=jnp.float32)
    inputs = jax.random.randint(k_in, (context_size,), 0, word_size,
                                dtype=jnp.int32)
    out1 = jax.block_until_ready(cbow_forward(inputs, params_f32, V))
    ref1 = reference_forward(inputs[None, :], emb, w1, b1, w2, b2)
    assert out1.shape == (1, word_size)
    assert jnp.allclose(out1, ref1, atol=1e-5, rtol=1e-5)

    # 2) Batched windows with bf16 MXU inputs (the throughput path).
    params_bf16, _ = prepare_cbow_params(emb, w1, b1, w2, b2,
                                         matmul_dtype=jnp.bfloat16)
    batch = 16
    idx_b = jax.random.randint(k_in, (batch, context_size), 0, word_size,
                               dtype=jnp.int32)
    out2 = jax.block_until_ready(
        cbow_forward_batched(idx_b, params_bf16, V, tile_b=8))
    ref2 = reference_forward(idx_b, emb, w1, b1, w2, b2)
    assert out2.shape == (batch, word_size)
    assert jnp.allclose(out2, ref2, atol=5e-2, rtol=0)

    print("KERNEL_OK")
</pallas_src>

<mosaic_0001>
module attributes {stable_mosaic.version = 11 : i64} {
  func.func @cbow_kernel(%arg0: i32, %arg1: memref<8x4xi32, #tpu.memory_space<smem>>, %arg2: memref<81x128xf32, #tpu.memory_space<vmem>>, %arg3: memref<128x128xf32, #tpu.memory_space<vmem>>, %arg4: memref<1x128xf32, #tpu.memory_space<vmem>>, %arg5: memref<128x128xf32, #tpu.memory_space<vmem>>, %arg6: memref<1x128xf32, #tpu.memory_space<vmem>>, %arg7: memref<8x128xf32, #tpu.memory_space<vmem>>, %arg8: memref<8x128xf32, #tpu.memory_space<vmem>>) attributes {dimension_semantics = [#tpu.dimension_semantics<parallel>], iteration_bounds = array<i64: 1>, scalar_prefetch = 1 : i64, scratch_operands = 1 : i64, tpu.core_type = #tpu.core_type<tc>, window_params = [{pipeline_mode = #tpu.pipeline_mode<synchronous>, transform_indices = @transform_0, window_bounds = array<i64: 81, 128>}, {pipeline_mode = #tpu.pipeline_mode<synchronous>, transform_indices = @transform_1, window_bounds = array<i64: 128, 128>}, {pipeline_mode = #tpu.pipeline_mode<synchronous>, transform_indices = @transform_2, window_bounds = array<i64: 1, 128>}, {pipeline_mode = #tpu.pipeline_mode<synchronous>, transform_indices = @transform_3, window_bounds = array<i64: 128, 128>}, {pipeline_mode = #tpu.pipeline_mode<synchronous>, transform_indices = @transform_4, window_bounds = array<i64: 1, 128>}, {transform_indices = @transform_5, window_bounds = array<i64: 8, 128>}]} {
    %c8_i32 = arith.constant 8 : i32
    %0 = arith.muli %arg0, %c8_i32 : i32
    %c0_i32 = arith.constant 0 : i32
    %1 = arith.addi %0, %c0_i32 : i32
    %2 = arith.index_cast %1 : i32 to index
    %c0 = arith.constant 0 : index
    %3 = memref.load %arg1[%2, %c0] : memref<8x4xi32, #tpu.memory_space<smem>>
    %4 = arith.index_cast %3 : i32 to index
    %c0_0 = arith.constant 0 : index
    %5 = vector.load %arg2[%4, %c0_0] : memref<81x128xf32, #tpu.memory_space<vmem>>, vector<1x128xf32>
    %c0_i32_1 = arith.constant 0 : i32
    %6 = arith.addi %0, %c0_i32_1 : i32
    %7 = arith.index_cast %6 : i32 to index
    %c1 = arith.constant 1 : index
    %8 = memref.load %arg1[%7, %c1] : memref<8x4xi32, #tpu.memory_space<smem>>
    %9 = arith.index_cast %8 : i32 to index
    %c0_2 = arith.constant 0 : index
    %10 = vector.load %arg2[%9, %c0_2] : memref<81x128xf32, #tpu.memory_space<vmem>>, vector<1x128xf32>
    %c0_i32_3 = arith.constant 0 : i32
    %11 = arith.addi %0, %c0_i32_3 : i32
    %12 = arith.index_cast %11 : i32 to index
    %c2 = arith.constant 2 : index
    %13 = memref.load %arg1[%12, %c2] : memref<8x4xi32, #tpu.memory_space<smem>>
    %14 = arith.index_cast %13 : i32 to index
    %c0_4 = arith.constant 0 : index
    %15 = vector.load %arg2[%14, %c0_4] : memref<81x128xf32, #tpu.memory_space<vmem>>, vector<1x128xf32>
    %c0_i32_5 = arith.constant 0 : i32
    %16 = arith.addi %0, %c0_i32_5 : i32
    %17 = arith.index_cast %16 : i32 to index
    %c3 = arith.constant 3 : index
    %18 = memref.load %arg1[%17, %c3] : memref<8x4xi32, #tpu.memory_space<smem>>
    %19 = arith.index_cast %18 : i32 to index
    %c0_6 = arith.constant 0 : index
    %20 = vector.load %arg2[%19, %c0_6] : memref<81x128xf32, #tpu.memory_space<vmem>>, vector<1x128xf32>
    %21 = arith.addf %5, %10 : vector<1x128xf32>
    %22 = arith.addf %15, %20 : vector<1x128xf32>
    %23 = arith.addf %21, %22 : vector<1x128xf32>
    %c0_7 = arith.constant 0 : index
    %c0_8 = arith.constant 0 : index
    %24 = vector.load %arg8[%c0_7, %c0_8] : memref<8x128xf32, #tpu.memory_space<vmem>>, vector<1x128xf32>
    tpu.vector_store %arg8[%c0_7, %c0_8], %23 {strides = array<i32>} : memref<8x128xf32, #tpu.memory_space<vmem>>, vector<1x128xf32>,
    %c1_i32 = arith.constant 1 : i32
    %25 = arith.addi %0, %c1_i32 : i32
    %26 = arith.index_cast %25 : i32 to index
    %c0_9 = arith.constant 0 : index
    %27 = memref.load %arg1[%26, %c0_9] : memref<8x4xi32, #tpu.memory_space<smem>>
    %28 = arith.index_cast %27 : i32 to index
    %c0_10 = arith.constant 0 : index
    %29 = vector.load %arg2[%28, %c0_10] : memref<81x128xf32, #tpu.memory_space<vmem>>, vector<1x128xf32>
    %c1_i32_11 = arith.constant 1 : i32
    %30 = arith.addi %0, %c1_i32_11 : i32
    %31 = arith.index_cast %30 : i32 to index
    %c1_12 = arith.constant 1 : index
    %32 = memref.load %arg1[%31, %c1_12] : memref<8x4xi32, #tpu.memory_space<smem>>
    %33 = arith.index_cast %32 : i32 to index
    %c0_13 = arith.constant 0 : index
    %34 = vector.load %arg2[%33, %c0_13] : memref<81x128xf32, #tpu.memory_space<vmem>>, vector<1x128xf32>
    %c1_i32_14 = arith.constant 1 : i32
    %35 = arith.addi %0, %c1_i32_14 : i32
    %36 = arith.index_cast %35 : i32 to index
    %c2_15 = arith.constant 2 : index
    %37 = memref.load %arg1[%36, %c2_15] : memref<8x4xi32, #tpu.memory_space<smem>>
    %38 = arith.index_cast %37 : i32 to index
    %c0_16 = arith.constant 0 : index
    %39 = vector.load %arg2[%38, %c0_16] : memref<81x128xf32, #tpu.memory_space<vmem>>, vector<1x128xf32>
    %c1_i32_17 = arith.constant 1 : i32
    %40 = arith.addi %0, %c1_i32_17 : i32
    %41 = arith.index_cast %40 : i32 to index
    %c3_18 = arith.constant 3 : index
    %42 = memref.load %arg1[%41, %c3_18] : memref<8x4xi32, #tpu.memory_space<smem>>
    %43 = arith.index_cast %42 : i32 to index
    %c0_19 = arith.constant 0 : index
    %44 = vector.load %arg2[%43, %c0_19] : memref<81x128xf32, #tpu.memory_space<vmem>>, vector<1x128xf32>
    %45 = arith.addf %29, %34 : vector<1x128xf32>
    %46 = arith.addf %39, %44 : vector<1x128xf32>
    %47 = arith.addf %45, %46 : vector<1x128xf32>
    %c1_20 = arith.constant 1 : index
    %c0_21 = arith.constant 0 : index
    %48 = vector.load %arg8[%c1_20, %c0_21] : memref<8x128xf32, #tpu.memory_space<vmem>>, vector<1x128xf32>
    tpu.vector_store %arg8[%c1_20, %c0_21], %47 {strides = array<i32>} : memref<8x128xf32, #tpu.memory_space<vmem>>, vector<1x128xf32>,
    %c2_i32 = arith.constant 2 : i32
    %49 = arith.addi %0, %c2_i32 : i32
    %50 = arith.index_cast %49 : i32 to index
    %c0_22 = arith.constant 0 : index
    %51 = memref.load %arg1[%50, %c0_22] : memref<8x4xi32, #tpu.memory_space<smem>>
    %52 = arith.index_cast %51 : i32 to index
    %c0_23 = arith.constant 0 : index
    %53 = vector.load %arg2[%52, %c0_23] : memref<81x128xf32, #tpu.memory_space<vmem>>, vector<1x128xf32>
    %c2_i32_24 = arith.constant 2 : i32
    %54 = arith.addi %0, %c2_i32_24 : i32
    %55 = arith.index_cast %54 : i32 to index
    %c1_25 = arith.constant 1 : index
    %56 = memref.load %arg1[%55, %c1_25] : memref<8x4xi32, #tpu.memory_space<smem>>
    %57 = arith.index_cast %56 : i32 to index
    %c0_26 = arith.constant 0 : index
    %58 = vector.load %arg2[%57, %c0_26] : memref<81x128xf32, #tpu.memory_space<vmem>>, vector<1x128xf32>
    %c2_i32_27 = arith.constant 2 : i32
    %59 = arith.addi %0, %c2_i32_27 : i32
    %60 = arith.index_cast %59 : i32 to index
    %c2_28 = arith.constant 2 : index
    %61 = memref.load %arg1[%60, %c2_28] : memref<8x4xi32, #tpu.memory_space<smem>>
    %62 = arith.index_cast %61 : i32 to index
    %c0_29 = arith.constant 0 : index
    %63 = vector.load %arg2[%62, %c0_29] : memref<81x128xf32, #tpu.memory_space<vmem>>, vector<1x128xf32>
    %c2_i32_30 = arith.constant 2 : i32
    %64 = arith.addi %0, %c2_i32_30 : i32
    %65 = arith.index_cast %64 : i32 to index
    %c3_31 = arith.constant 3 : index
    %66 = memref.load %arg1[%65, %c3_31] : memref<8x4xi32, #tpu.memory_space<smem>>
    %67 = arith.index_cast %66 : i32 to index
    %c0_32 = arith.constant 0 : index
    %68 = vector.load %arg2[%67, %c0_32] : memref<81x128xf32, #tpu.memory_space<vmem>>, vector<1x128xf32>
    %69 = arith.addf %53, %58 : vector<1x128xf32>
    %70 = arith.addf %63, %68 : vector<1x128xf32>
    %71 = arith.addf %69, %70 : vector<1x128xf32>
    %c2_33 = arith.constant 2 : index
    %c0_34 = arith.constant 0 : index
    %72 = vector.load %arg8[%c2_33, %c0_34] : memref<8x128xf32, #tpu.memory_space<vmem>>, vector<1x128xf32>
    tpu.vector_store %arg8[%c2_33, %c0_34], %71 {strides = array<i32>} : memref<8x128xf32, #tpu.memory_space<vmem>>, vector<1x128xf32>,
    %c3_i32 = arith.constant 3 : i32
    %73 = arith.addi %0, %c3_i32 : i32
    %74 = arith.index_cast %73 : i32 to index
    %c0_35 = arith.constant 0 : index
    %75 = memref.load %arg1[%74, %c0_35] : memref<8x4xi32, #tpu.memory_space<smem>>
    %76 = arith.index_cast %75 : i32 to index
    %c0_36 = arith.constant 0 : index
    %77 = vector.load %arg2[%76, %c0_36] : memref<81x128xf32, #tpu.memory_space<vmem>>, vector<1x128xf32>
    %c3_i32_37 = arith.constant 3 : i32
    %78 = arith.addi %0, %c3_i32_37 : i32
    %79 = arith.index_cast %78 : i32 to index
    %c1_38 = arith.constant 1 : index
    %80 = memref.load %arg1[%79, %c1_38] : memref<8x4xi32, #tpu.memory_space<smem>>
    %81 = arith.index_cast %80 : i32 to index
    %c0_39 = arith.constant 0 : index
    %82 = vector.load %arg2[%81, %c0_39] : memref<81x128xf32, #tpu.memory_space<vmem>>, vector<1x128xf32>
    %c3_i32_40 = arith.constant 3 : i32
    %83 = arith.addi %0, %c3_i32_40 : i32
    %84 = arith.index_cast %83 : i32 to index
    %c2_41 = arith.constant 2 : index
    %85 = memref.load %arg1[%84, %c2_41] : memref<8x4xi32, #tpu.memory_space<smem>>
    %86 = arith.index_cast %85 : i32 to index
    %c0_42 = arith.constant 0 : index
    %87 = vector.load %arg2[%86, %c0_42] : memref<81x128xf32, #tpu.memory_space<vmem>>, vector<1x128xf32>
    %c3_i32_43 = arith.constant 3 : i32
    %88 = arith.addi %0, %c3_i32_43 : i32
    %89 = arith.index_cast %88 : i32 to index
    %c3_44 = arith.constant 3 : index
    %90 = memref.load %arg1[%89, %c3_44] : memref<8x4xi32, #tpu.memory_space<smem>>
    %91 = arith.index_cast %90 : i32 to index
    %c0_45 = arith.constant 0 : index
    %92 = vector.load %arg2[%91, %c0_45] : memref<81x128xf32, #tpu.memory_space<vmem>>, vector<1x128xf32>
    %93 = arith.addf %77, %82 : vector<1x128xf32>
    %94 = arith.addf %87, %92 : vector<1x128xf32>
    %95 = arith.addf %93, %94 : vector<1x128xf32>
    %c3_46 = arith.constant 3 : index
    %c0_47 = arith.constant 0 : index
    %96 = vector.load %arg8[%c3_46, %c0_47] : memref<8x128xf32, #tpu.memory_space<vmem>>, vector<1x128xf32>
    tpu.vector_store %arg8[%c3_46, %c0_47], %95 {strides = array<i32>} : memref<8x128xf32, #tpu.memory_space<vmem>>, vector<1x128xf32>,
    %c4_i32 = arith.constant 4 : i32
    %97 = arith.addi %0, %c4_i32 : i32
    %98 = arith.index_cast %97 : i32 to index
    %c0_48 = arith.constant 0 : index
    %99 = memref.load %arg1[%98, %c0_48] : memref<8x4xi32, #tpu.memory_space<smem>>
    %100 = arith.index_cast %99 : i32 to index
    %c0_49 = arith.constant 0 : index
    %101 = vector.load %arg2[%100, %c0_49] : memref<81x128xf32, #tpu.memory_space<vmem>>, vector<1x128xf32>
    %c4_i32_50 = arith.constant 4 : i32
    %102 = arith.addi %0, %c4_i32_50 : i32
    %103 = arith.index_cast %102 : i32 to index
    %c1_51 = arith.constant 1 : index
    %104 = memref.load %arg1[%103, %c1_51] : memref<8x4xi32, #tpu.memory_space<smem>>
    %105 = arith.index_cast %104 : i32 to index
    %c0_52 = arith.constant 0 : index
    %106 = vector.load %arg2[%105, %c0_52] : memref<81x128xf32, #tpu.memory_space<vmem>>, vector<1x128xf32>
    %c4_i32_53 = arith.constant 4 : i32
    %107 = arith.addi %0, %c4_i32_53 : i32
    %108 = arith.index_cast %107 : i32 to index
    %c2_54 = arith.constant 2 : index
    %109 = memref.load %arg1[%108, %c2_54] : memref<8x4xi32, #tpu.memory_space<smem>>
    %110 = arith.index_cast %109 : i32 to index
    %c0_55 = arith.constant 0 : index
    %111 = vector.load %arg2[%110, %c0_55] : memref<81x128xf32, #tpu.memory_space<vmem>>, vector<1x128xf32>
    %c4_i32_56 = arith.constant 4 : i32
    %112 = arith.addi %0, %c4_i32_56 : i32
    %113 = arith.index_cast %112 : i32 to index
    %c3_57 = arith.constant 3 : index
    %114 = memref.load %arg1[%113, %c3_57] : memref<8x4xi32, #tpu.memory_space<smem>>
    %115 = arith.index_cast %114 : i32 to index
    %c0_58 = arith.constant 0 : index
    %116 = vector.load %arg2[%115, %c0_58] : memref<81x128xf32, #tpu.memory_space<vmem>>, vector<1x128xf32>
    %117 = arith.addf %101, %106 : vector<1x128xf32>
    %118 = arith.addf %111, %116 : vector<1x128xf32>
    %119 = arith.addf %117, %118 : vector<1x128xf32>
    %c4 = arith.constant 4 : index
    %c0_59 = arith.constant 0 : index
    %120 = vector.load %arg8[%c4, %c0_59] : memref<8x128xf32, #tpu.memory_space<vmem>>, vector<1x128xf32>
    tpu.vector_store %arg8[%c4, %c0_59], %119 {strides = array<i32>} : memref<8x128xf32, #tpu.memory_space<vmem>>, vector<1x128xf32>,
    %c5_i32 = arith.constant 5 : i32
    %121 = arith.addi %0, %c5_i32 : i32
    %122 = arith.index_cast %121 : i32 to index
    %c0_60 = arith.constant 0 : index
    %123 = memref.load %arg1[%122, %c0_60] : memref<8x4xi32, #tpu.memory_space<smem>>
    %124 = arith.index_cast %123 : i32 to index
    %c0_61 = arith.constant 0 : index
    %125 = vector.load %arg2[%124, %c0_61] : memref<81x128xf32, #tpu.memory_space<vmem>>, vector<1x128xf32>
    %c5_i32_62 = arith.constant 5 : i32
    %126 = arith.addi %0, %c5_i32_62 : i32
    %127 = arith.index_cast %126 : i32 to index
    %c1_63 = arith.constant 1 : index
    %128 = memref.load %arg1[%127, %c1_63] : memref<8x4xi32, #tpu.memory_space<smem>>
    %129 = arith.index_cast %128 : i32 to index
    %c0_64 = arith.constant 0 : index
    %130 = vector.load %arg2[%129, %c0_64] : memref<81x128xf32, #tpu.memory_space<vmem>>, vector<1x128xf32>
    %c5_i32_65 = arith.constant 5 : i32
    %131 = arith.addi %0, %c5_i32_65 : i32
    %132 = arith.index_cast %131 : i32 to index
    %c2_66 = arith.constant 2 : index
    %133 = memref.load %arg1[%132, %c2_66] : memref<8x4xi32, #tpu.memory_space<smem>>
    %134 = arith.index_cast %133 : i32 to index
    %c0_67 = arith.constant 0 : index
    %135 = vector.load %arg2[%134, %c0_67] : memref<81x128xf32, #tpu.memory_space<vmem>>, vector<1x128xf32>
    %c5_i32_68 = arith.constant 5 : i32
    %136 = arith.addi %0, %c5_i32_68 : i32
    %137 = arith.index_cast %136 : i32 to index
    %c3_69 = arith.constant 3 : index
    %138 = memref.load %arg1[%137, %c3_69] : memref<8x4xi32, #tpu.memory_space<smem>>
    %139 = arith.index_cast %138 : i32 to index
    %c0_70 = arith.constant 0 : index
    %140 = vector.load %arg2[%139, %c0_70] : memref<81x128xf32, #tpu.memory_space<vmem>>, vector<1x128xf32>
    %141 = arith.addf %125, %130 : vector<1x128xf32>
    %142 = arith.addf %135, %140 : vector<1x128xf32>
    %143 = arith.addf %141, %142 : vector<1x128xf32>
    %c5 = arith.constant 5 : index
    %c0_71 = arith.constant 0 : index
    %144 = vector.load %arg8[%c5, %c0_71] : memref<8x128xf32, #tpu.memory_space<vmem>>, vector<1x128xf32>
    tpu.vector_store %arg8[%c5, %c0_71], %143 {strides = array<i32>} : memref<8x128xf32, #tpu.memory_space<vmem>>, vector<1x128xf32>,
    %c6_i32 = arith.constant 6 : i32
    %145 = arith.addi %0, %c6_i32 : i32
    %146 = arith.index_cast %145 : i32 to index
    %c0_72 = arith.constant 0 : index
    %147 = memref.load %arg1[%146, %c0_72] : memref<8x4xi32, #tpu.memory_space<smem>>
    %148 = arith.index_cast %147 : i32 to index
    %c0_73 = arith.constant 0 : index
    %149 = vector.load %arg2[%148, %c0_73] : memref<81x128xf32, #tpu.memory_space<vmem>>, vector<1x128xf32>
    %c6_i32_74 = arith.constant 6 : i32
    %150 = arith.addi %0, %c6_i32_74 : i32
    %151 = arith.index_cast %150 : i32 to index
    %c1_75 = arith.constant 1 : index
    %152 = memref.load %arg1[%151, %c1_75] : memref<8x4xi32, #tpu.memory_space<smem>>
    %153 = arith.index_cast %152 : i32 to index
    %c0_76 = arith.constant 0 : index
    %154 = vector.load %arg2[%153, %c0_76] : memref<81x128xf32, #tpu.memory_space<vmem>>, vector<1x128xf32>
    %c6_i32_77 = arith.constant 6 : i32
    %155 = arith.addi %0, %c6_i32_77 : i32
    %156 = arith.index_cast %155 : i32 to index
    %c2_78 = arith.constant 2 : index
    %157 = memref.load %arg1[%156, %c2_78] : memref<8x4xi32, #tpu.memory_space<smem>>
    %158 = arith.index_cast %157 : i32 to index
    %c0_79 = arith.constant 0 : index
    %159 = vector.load %arg2[%158, %c0_79] : memref<81x128xf32, #tpu.memory_space<vmem>>, vector<1x128xf32>
    %c6_i32_80 = arith.constant 6 : i32
    %160 = arith.addi %0, %c6_i32_80 : i32
    %161 = arith.index_cast %160 : i32 to index
    %c3_81 = arith.constant 3 : index
    %162 = memref.load %arg1[%161, %c3_81] : memref<8x4xi32, #tpu.memory_space<smem>>
    %163 = arith.index_cast %162 : i32 to index
    %c0_82 = arith.constant 0 : index
    %164 = vector.load %arg2[%163, %c0_82] : memref<81x128xf32, #tpu.memory_space<vmem>>, vector<1x128xf32>
    %165 = arith.addf %149, %154 : vector<1x128xf32>
    %166 = arith.addf %159, %164 : vector<1x128xf32>
    %167 = arith.addf %165, %166 : vector<1x128xf32>
    %c6 = arith.constant 6 : index
    %c0_83 = arith.constant 0 : index
    %168 = vector.load %arg8[%c6, %c0_83] : memref<8x128xf32, #tpu.memory_space<vmem>>, vector<1x128xf32>
    tpu.vector_store %arg8[%c6, %c0_83], %167 {strides = array<i32>} : memref<8x128xf32, #tpu.memory_space<vmem>>, vector<1x128xf32>,
    %c7_i32 = arith.constant 7 : i32
    %169 = arith.addi %0, %c7_i32 : i32
    %170 = arith.index_cast %169 : i32 to index
    %c0_84 = arith.constant 0 : index
    %171 = memref.load %arg1[%170, %c0_84] : memref<8x4xi32, #tpu.memory_space<smem>>
    %172 = arith.index_cast %171 : i32 to index
    %c0_85 = arith.constant 0 : index
    %173 = vector.load %arg2[%172, %c0_85] : memref<81x128xf32, #tpu.memory_space<vmem>>, vector<1x128xf32>
    %c7_i32_86 = arith.constant 7 : i32
    %174 = arith.addi %0, %c7_i32_86 : i32
    %175 = arith.index_cast %174 : i32 to index
    %c1_87 = arith.constant 1 : index
    %176 = memref.load %arg1[%175, %c1_87] : memref<8x4xi32, #tpu.memory_space<smem>>
    %177 = arith.index_cast %176 : i32 to index
    %c0_88 = arith.constant 0 : index
    %178 = vector.load %arg2[%177, %c0_88] : memref<81x128xf32, #tpu.memory_space<vmem>>, vector<1x128xf32>
    %c7_i32_89 = arith.constant 7 : i32
    %179 = arith.addi %0, %c7_i32_89 : i32
    %180 = arith.index_cast %179 : i32 to index
    %c2_90 = arith.constant 2 : index
    %181 = memref.load %arg1[%180, %c2_90] : memref<8x4xi32, #tpu.memory_space<smem>>
    %182 = arith.index_cast %181 : i32 to index
    %c0_91 = arith.constant 0 : index
    %183 = vector.load %arg2[%182, %c0_91] : memref<81x128xf32, #tpu.memory_space<vmem>>, vector<1x128xf32>
    %c7_i32_92 = arith.constant 7 : i32
    %184 = arith.addi %0, %c7_i32_92 : i32
    %185 = arith.index_cast %184 : i32 to index
    %c3_93 = arith.constant 3 : index
    %186 = memref.load %arg1[%185, %c3_93] : memref<8x4xi32, #tpu.memory_space<smem>>
    %187 = arith.index_cast %186 : i32 to index
    %c0_94 = arith.constant 0 : index
    %188 = vector.load %arg2[%187, %c0_94] : memref<81x128xf32, #tpu.memory_space<vmem>>, vector<1x128xf32>
    %189 = arith.addf %173, %178 : vector<1x128xf32>
    %190 = arith.addf %183, %188 : vector<1x128xf32>
    %191 = arith.addf %189, %190 : vector<1x128xf32>
    %c7 = arith.constant 7 : index
    %c0_95 = arith.constant 0 : index
    %192 = vector.load %arg8[%c7, %c0_95] : memref<8x128xf32, #tpu.memory_space<vmem>>, vector<1x128xf32>
    tpu.vector_store %arg8[%c7, %c0_95], %191 {strides = array<i32>} : memref<8x128xf32, #tpu.memory_space<vmem>>, vector<1x128xf32>,
    %c0_96 = arith.constant 0 : index
    %c0_97 = arith.constant 0 : index
    %193 = vector.load %arg8[%c0_96, %c0_97] : memref<8x128xf32, #tpu.memory_space<vmem>>, vector<8x128xf32>
    %c0_98 = arith.constant 0 : index
    %c0_99 = arith.constant 0 : index
    %194 = vector.load %arg3[%c0_98, %c0_99] : memref<128x128xf32, #tpu.memory_space<vmem>>, vector<128x128xf32>
    %cst = arith.constant dense<0.000000e+00> : vector<8x128xf32>
    %195 = tpu.matmul %193, %194, %cst {dimension_numbers = #tpu.dot_dimension_numbers<[1], [0], [0], [1], [0, 0, 1, 1], [], []>} : vector<8x128xf32>, vector<128x128xf32>, vector<8x128xf32> -> vector<8x128xf32>
    %c0_100 = arith.constant 0 : index
    %c0_101 = arith.constant 0 : index
    %196 = vector.load %arg4[%c0_100, %c0_101] : memref<1x128xf32, #tpu.memory_space<vmem>>, vector<1x128xf32>
    %197 = vector.broadcast %196 : vector<1x128xf32> to vector<8x128xf32>
    %198 = arith.addf %195, %197 : vector<8x128xf32>
    %cst_102 = arith.constant 0.000000e+00 : f32
    %199 = vector.broadcast %cst_102 : f32 to vector<8x128xf32>
    %200 = arith.maximumf %198, %199 : vector<8x128xf32>
    %c0_103 = arith.constant 0 : index
    %c0_104 = arith.constant 0 : index
    %201 = vector.load %arg5[%c0_103, %c0_104] : memref<128x128xf32, #tpu.memory_space<vmem>>, vector<128x128xf32>
    %cst_105 = arith.constant dense<0.000000e+00> : vector<8x128xf32>
    %202 = tpu.matmul %200, %201, %cst_105 {dimension_numbers = #tpu.dot_dimension_numbers<[1], [0], [0], [1], [0, 0, 1, 1], [], []>} : vector<8x128xf32>, vector<128x128xf32>, vector<8x128xf32> -> vector<8x128xf32>
    %c0_106 = arith.constant 0 : index
    %c0_107 = arith.constant 0 : index
    %203 = vector.load %arg6[%c0_106, %c0_107] : memref<1x128xf32, #tpu.memory_space<vmem>>, vector<1x128xf32>
    %204 = vector.broadcast %203 : vector<1x128xf32> to vector<8x128xf32>
    %205 = arith.addf %202, %204 : vector<8x128xf32>
    %206 = tpu.iota {dimensions = array<i32: 1>} : vector<8x128xi32>
    %c81_i32 = arith.constant 81 : i32
    %207 = vector.broadcast %c81_i32 : i32 to vector<8x128xi32>
    %208 = arith.cmpi slt, %206, %207 : vector<8x128xi32>
    %cst_108 = arith.constant -1.000000e+30 : f32
    %209 = vector.broadcast %cst_108 : f32 to vector<8x128xf32>
    %210 = arith.select %208, %205, %209 : vector<8x128xi1>, vector<8x128xf32>
    %cst_109 = arith.constant dense<0xFF800000> : vector<8xf32>
    %211 = vector.multi_reduction <maximumf>, %210, %cst_109 [1] : vector<8x128xf32> to vector<8xf32>
    %212 = vector.shape_cast %211 : vector<8xf32> to vector<8x1xf32>
    %213 = vector.broadcast %212 : vector<8x1xf32> to vector<8x128xf32>
    %214 = arith.subf %210, %213 : vector<8x128xf32>
    %215 = math.exp %214 : vector<8x128xf32>
    %cst_110 = arith.constant dense<0.000000e+00> : vector<8xf32>
    %216 = vector.multi_reduction <add>, %215, %cst_110 [1] : vector<8x128xf32> to vector<8xf32>
    %217 = vector.shape_cast %216 : vector<8xf32> to vector<8x1xf32>
    %218 = math.log %217 : vector<8x1xf32>
    %219 = vector.broadcast %218 : vector<8x1xf32> to vector<8x128xf32>
    %220 = arith.subf %214, %219 : vector<8x128xf32>
    %c0_111 = arith.constant 0 : index
    %c0_112 = arith.constant 0 : index
    %221 = vector.load %arg7[%c0_111, %c0_112] : memref<8x128xf32, #tpu.memory_space<vmem>>, vector<8x128xf32>
    tpu.vector_store %arg7[%c0_111, %c0_112], %220 {strides = array<i32>} : memref<8x128xf32, #tpu.memory_space<vmem>>, vector<8x128xf32>,
    return
  }
  func.func @transform_0(%arg0: i32, %arg1: memref<8x4xi32, #tpu.memory_space<smem>>) -> (i32, i32) {
    %c0_i32 = arith.constant 0 : i32
    %c0_i32_0 = arith.constant 0 : i32
    %c0_i32_1 = arith.constant 0 : i32
    return %c0_i32, %c0_i32_0 : i32, i32
  }
  func.func @transform_1(%arg0: i32, %arg1: memref<8x4xi32, #tpu.memory_space<smem>>) -> (i32, i32) {
    %c0_i32 = arith.constant 0 : i32
    %c0_i32_0 = arith.constant 0 : i32
    %c0_i32_1 = arith.constant 0 : i32
    return %c0_i32, %c0_i32_0 : i32, i32
  }
  func.func @transform_2(%arg0: i32, %arg1: memref<8x4xi32, #tpu.memory_space<smem>>) -> (i32, i32) {
    %c0_i32 = arith.constant 0 : i32
    %c0_i32_0 = arith.constant 0 : i32
    %c0_i32_1 = arith.constant 0 : i32
    return %c0_i32, %c0_i32_0 : i32, i32
  }
  func.func @transform_3(%arg0: i32, %arg1: memref<8x4xi32, #tpu.memory_space<smem>>) -> (i32, i32) {
    %c0_i32 = arith.constant 0 : i32
    %c0_i32_0 = arith.constant 0 : i32
    %c0_i32_1 = arith.constant 0 : i32
    return %c0_i32, %c0_i32_0 : i32, i32
  }
  func.func @transform_4(%arg0: i32, %arg1: memref<8x4xi32, #tpu.memory_space<smem>>) -> (i32, i32) {
    %c0_i32 = arith.constant 0 : i32
    %c0_i32_0 = arith.constant 0 : i32
    %c0_i32_1 = arith.constant 0 : i32
    return %c0_i32, %c0_i32_0 : i32, i32
  }
  func.func @transform_5(%arg0: i32, %arg1: memref<8x4xi32, #tpu.memory_space<smem>>) -> (i32, i32) {
    %c0_i32 = arith.constant 0 : i32
    %c0_i32_0 = arith.constant 0 : i32
    return %arg0, %c0_i32 : i32, i32
  }
}

</mosaic_0001>

<llo_original>
// kernel: tpu_custom_call.1
$region0: #{tpu_custom_call.1}
  #allocation0 [shape = 'u32[]', space=smem, size = 0x4, offset = 0x4, fixed_abs, tag = 'smem constant byte address 0x4 - core index']
  #allocation1 [shape = 'u32[144,128]{1,0:T(1,128)}', space=vmem, size = 0x12000, scoped, tag = 'internal scratch']
  #allocation2 [shape = 'f32[8,128]{1,0:T(8,128)}', space=vmem, size = 0x1000, scoped, tag = 'scratch operand']
  #allocation3 [shape = 's32[1]{0}', space=sflag, size = 0x4, scoped, tag = 'scoped memory for tpu_custom_call.1']
  #allocation4 [shape = 'u8[4096]{0}', space=smem, size = 0x1000, scoped, tag = 'prefetched SMEM operand 0']
  %s0 = inlined_call_operand.vmem [shape: s32[8,4], index: 0, kind: input, shape index: {}]
  %s1 = inlined_call_operand.hbm [shape: f32[81,128], index: 1, kind: input, shape index: {}]
  %s2 = inlined_call_operand.hbm [shape: f32[128,128], index: 2, kind: input, shape index: {}]
  %s3 = inlined_call_operand.vmem [shape: f32[1,128], index: 3, kind: input, shape index: {}]
  %s4 = inlined_call_operand.hbm [shape: f32[128,128], index: 4, kind: input, shape index: {}]
  %s5 = inlined_call_operand.vmem [shape: f32[1,128], index: 5, kind: input, shape index: {}]
  %s6 = inlined_call_operand.hbm [shape: f32[8,128], index: 6, kind: output, shape index: {}]
  %s7 = sld [smem:[#allocation0]]
  $region42: #{tpu_custom_call.1} parent=0
    _
  %s9 = ssub.s32 1, %s7
  %s10 = scalar_select 0, %s9, %s7
  %s11 = sshll.u32 %s0, 4
  %s12 = int_to_ptr.vmem [resolvable:$true] %s11
  %14 = dma.vmem_to_smem %s12, 128, [#allocation4], [#allocation3]
  %15 = dma.done [#allocation3], 128
  %16 = sfence
  $region1: #{tpu_custom_call.1} parent=0
    #allocation5 [shape = 'u8[45056]{0}', space=vmem, size = 0xb000, scoped, tag = 'input window, operand 1, single buffered']
    #allocation6 [shape = 's32[1]{0}', space=sflag, size = 0x4, scoped, tag = 'scoped memory for tpu_custom_call.1']
    #allocation7 [shape = 's32[1]{0}', space=sflag, size = 0x4, scoped, tag = 'scoped memory for tpu_custom_call.1']
    #allocation8 [shape = 'u8[65536]{0}', space=vmem, size = 0x10000, scoped, tag = 'input window, operand 2, single buffered']
    #allocation9 [shape = 's32[1]{0}', space=sflag, size = 0x4, scoped, tag = 'scoped memory for tpu_custom_call.1']
    #allocation10 [shape = 'u8[65536]{0}', space=vmem, size = 0x10000, scoped, tag = 'input window, operand 4, single buffered']
    #allocation11 [shape = 'u8[4096]{0}', space=vmem, size = 0x1000, scoped, tag = 'output window, operand 0, single buffered']
    %17 = vsyncpa [#allocation6], 0
    %18 = vsyncpa [#allocation9], 0
    %19 = vsyncpa [#allocation7], 0
    // Predicated region
    $region2: #{tpu_custom_call.1} parent=1 // pred_check
      _
    $region3: #{tpu_custom_call.1} parent=1 // pred_check_branch
      %21 = sbr.rel (0) target = $region5
    $region4: #{tpu_custom_call.1} parent=1 // pred_region
      %s23 = ssub.s32 1408, 1408
      %24 = vsyncadd [#allocation6], %s23
      %s25 = sshll.u32 [#allocation5], 4
      %s26 = int_to_ptr.vmem [resolvable:$true] %s25
      %31 = dma.hbm_to_vmem [thread:$0]  %s1, 1408, %s26, [#allocation6], 128, 128, 8
    $region5: #{tpu_custom_call.1} parent=1 // pred_fallthru
      _
    // Predicated region
    $region6: #{tpu_custom_call.1} parent=1 // pred_check
      _
    $region7: #{tpu_custom_call.1} parent=1 // pred_check_branch
      %33 = sbr.rel (0) target = $region9
    $region8: #{tpu_custom_call.1} parent=1 // pred_region
      %s35 = ssub.s32 2048, 2048
      %36 = vsyncadd [#allocation9], %s35
      %s37 = sshll.u32 [#allocation8], 4
      %s38 = int_to_ptr.vmem [resolvable:$true] %s37
      %43 = dma.hbm_to_vmem [thread:$0]  %s2, 2048, %s38, [#allocation9], 128, 128, 8
    $region9: #{tpu_custom_call.1} parent=1 // pred_fallthru
      _
    // Predicated region
    $region10: #{tpu_custom_call.1} parent=1 // pred_check
      _
    $region11: #{tpu_custom_call.1} parent=1 // pred_check_branch
      %45 = sbr.rel (0) target = $region13
    $region12: #{tpu_custom_call.1} parent=1 // pred_region
      _
    $region13: #{tpu_custom_call.1} parent=1 // pred_fallthru
      _
    // Predicated region
    $region14: #{tpu_custom_call.1} parent=1 // pred_check
      _
    $region15: #{tpu_custom_call.1} parent=1 // pred_check_branch
      %47 = sbr.rel (0) target = $region17
    $region16: #{tpu_custom_call.1} parent=1 // pred_region
      %s49 = ssub.s32 2048, 2048
      %50 = vsyncadd [#allocation9], %s49
      %s51 = sshll.u32 [#allocation10], 4
      %s52 = int_to_ptr.vmem [resolvable:$true] %s51
      %57 = dma.hbm_to_vmem [thread:$0]  %s4, 2048, %s52, [#allocation9], 128, 128, 8
    $region17: #{tpu_custom_call.1} parent=1 // pred_fallthru
      _
    // Predicated region
    $region18: #{tpu_custom_call.1} parent=1 // pred_check
      _
    $region19: #{tpu_custom_call.1} parent=1 // pred_check_branch
      %59 = sbr.rel (0) target = $region21
    $region20: #{tpu_custom_call.1} parent=1 // pred_region
      _
    $region21: #{tpu_custom_call.1} parent=1 // pred_fallthru
      _
    // Predicated region
    $region22: #{tpu_custom_call.1} parent=1 // pred_check
      _
    $region23: #{tpu_custom_call.1} parent=1 // pred_check_branch
      %61 = sbr.rel (0) target = $region25
    $region24: #{tpu_custom_call.1} parent=1 // pred_region
      %62 = dma.done [#allocation6], 1408
    $region25: #{tpu_custom_call.1} parent=1 // pred_fallthru
      _
    // Predicated region
    $region26: #{tpu_custom_call.1} parent=1 // pred_check
      _
    $region27: #{tpu_custom_call.1} parent=1 // pred_check_branch
      %64 = sbr.rel (0) target = $region29
    $region28: #{tpu_custom_call.1} parent=1 // pred_region
      %65 = dma.done [#allocation9], 2048
    $region29: #{tpu_custom_call.1} parent=1 // pred_fallthru
      _
    // Predicated region
    $region30: #{tpu_custom_call.1} parent=1 // pred_check
      _
    $region31: #{tpu_custom_call.1} parent=1 // pred_check_branch
      %67 = sbr.rel (0) target = $region33
    $region32: #{tpu_custom_call.1} parent=1 // pred_region
      %68 = dma.done [#allocation9], 2048
    $region33: #{tpu_custom_call.1} parent=1 // pred_fallthru
      _
    %s69 = smul.u32 0, 8
    %s70 = smul.u32 %s69, 128
    %s71 = sld [smem:[#allocation4 + %s70]]
    %s72 = scalar_lea.vmem [#allocation5], %s71
    %v73 = vld [vmem:[%s72] sm:$0x1]
    %s74 = sadd.s32 %s70, 1
    %s75 = sld [smem:[#allocation4 + %s74]]
    %s76 = scalar_lea.vmem [#allocation5], %s75
    %v77 = vld [vmem:[%s76] sm:$0x1]
    %s78 = sadd.s32 %s70, 2
    %s79 = sld [smem:[#allocation4 + %s78]]
    %s80 = scalar_lea.vmem [#allocation5], %s79
    %v81 = vld [vmem:[%s80] sm:$0x1]
    %s82 = sadd.s32 %s70, 3
    %s83 = sld [smem:[#allocation4 + %s82]]
    %s84 = scalar_lea.vmem [#allocation5], %s83
    %v85 = vld [vmem:[%s84] sm:$0x1]
    %v86 = vadd.f32 %v73, %v77
    %v87 = vadd.f32 %v81, %v85
    %v88 = vadd.f32 %v86, %v87
    %89 = vst [vmem:[#allocation2] sm:$0x1] %v88
    %s90 = sadd.s32 %s69, 1
    %s91 = smul.u32 %s90, 128
    %s92 = sld [smem:[#allocation4 + %s91]]
    %s93 = scalar_lea.vmem [#allocation5], %s92
    %v94 = vld [vmem:[%s93] sm:$0x1]
    %s95 = sadd.s32 %s91, 1
    %s96 = sld [smem:[#allocation4 + %s95]]
    %s97 = scalar_lea.vmem [#allocation5], %s96
    %v98 = vld [vmem:[%s97] sm:$0x1]
    %s99 = sadd.s32 %s91, 2
    %s100 = sld [smem:[#allocation4 + %s99]]
    %s101 = scalar_lea.vmem [#allocation5], %s100
    %v102 = vld [vmem:[%s101] sm:$0x1]
    %s103 = sadd.s32 %s91, 3
    %s104 = sld [smem:[#allocation4 + %s103]]
    %s105 = scalar_lea.vmem [#allocation5], %s104
    %v106 = vld [vmem:[%s105] sm:$0x1]
    %v107 = vadd.f32 %v94, %v98
    %v108 = vadd.f32 %v102, %v106
    %v109 = vadd.f32 %v107, %v108
    %110 = vst [vmem:[#allocation2 + $0x1] sm:$0x1] %v109
    %s111 = sadd.s32 %s69, 2
    %s112 = smul.u32 %s111, 128
    %s113 = sld [smem:[#allocation4 + %s112]]
    %s114 = scalar_lea.vmem [#allocation5], %s113
    %v115 = vld [vmem:[%s114] sm:$0x1]
    %s116 = sadd.s32 %s112, 1
    %s117 = sld [smem:[#allocation4 + %s116]]
    %s118 = scalar_lea.vmem [#allocation5], %s117
    %v119 = vld [vmem:[%s118] sm:$0x1]
    %s120 = sadd.s32 %s112, 2
    %s121 = sld [smem:[#allocation4 + %s120]]
    %s122 = scalar_lea.vmem [#allocation5], %s121
    %v123 = vld [vmem:[%s122] sm:$0x1]
    %s124 = sadd.s32 %s112, 3
    %s125 = sld [smem:[#allocation4 + %s124]]
    %s126 = scalar_lea.vmem [#allocation5], %s125
    %v127 = vld [vmem:[%s126] sm:$0x1]
    %v128 = vadd.f32 %v115, %v119
    %v129 = vadd.f32 %v123, %v127
    %v130 = vadd.f32 %v128, %v129
    %131 = vst [vmem:[#allocation2 + $0x2] sm:$0x1] %v130
    %s132 = sadd.s32 %s69, 3
    %s133 = smul.u32 %s132, 128
    %s134 = sld [smem:[#allocation4 + %s133]]
    %s135 = scalar_lea.vmem [#allocation5], %s134
    %v136 = vld [vmem:[%s135] sm:$0x1]
    %s137 = sadd.s32 %s133, 1
    %s138 = sld [smem:[#allocation4 + %s137]]
    %s139 = scalar_lea.vmem [#allocation5], %s138
    %v140 = vld [vmem:[%s139] sm:$0x1]
    %s141 = sadd.s32 %s133, 2
    %s142 = sld [smem:[#allocation4 + %s141]]
    %s143 = scalar_lea.vmem [#allocation5], %s142
    %v144 = vld [vmem:[%s143] sm:$0x1]
    %s145 = sadd.s32 %s133, 3
    %s146 = sld [smem:[#allocation4 + %s145]]
    %s147 = scalar_lea.vmem [#allocation5], %s146
    %v148 = vld [vmem:[%s147] sm:$0x1]
    %v149 = vadd.f32 %v136, %v140
    %v150 = vadd.f32 %v144, %v148
    %v151 = vadd.f32 %v149, %v150
    %152 = vst [vmem:[#allocation2 + $0x3] sm:$0x1] %v151
    %s153 = sadd.s32 %s69, 4
    %s154 = smul.u32 %s153, 128
    %s155 = sld [smem:[#allocation4 + %s154]]
    %s156 = scalar_lea.vmem [#allocation5], %s155
    %v157 = vld [vmem:[%s156] sm:$0x1]
    %s158 = sadd.s32 %s154, 1
    %s159 = sld [smem:[#allocation4 + %s158]]
    %s160 = scalar_lea.vmem [#allocation5], %s159
    %v161 = vld [vmem:[%s160] sm:$0x1]
    %s162 = sadd.s32 %s154, 2
    %s163 = sld [smem:[#allocation4 + %s162]]
    %s164 = scalar_lea.vmem [#allocation5], %s163
    %v165 = vld [vmem:[%s164] sm:$0x1]
    %s166 = sadd.s32 %s154, 3
    %s167 = sld [smem:[#allocation4 + %s166]]
    %s168 = scalar_lea.vmem [#allocation5], %s167
    %v169 = vld [vmem:[%s168] sm:$0x1]
    %v170 = vadd.f32 %v157, %v161
    %v171 = vadd.f32 %v165, %v169
    %v172 = vadd.f32 %v170, %v171
    %173 = vst [vmem:[#allocation2 + $0x4] sm:$0x1] %v172
    %s174 = sadd.s32 %s69, 5
    %s175 = smul.u32 %s174, 128
    %s176 = sld [smem:[#allocation4 + %s175]]
    %s177 = scalar_lea.vmem [#allocation5], %s176
    %v178 = vld [vmem:[%s177] sm:$0x1]
    %s179 = sadd.s32 %s175, 1
    %s180 = sld [smem:[#allocation4 + %s179]]
    %s181 = scalar_lea.vmem [#allocation5], %s180
    %v182 = vld [vmem:[%s181] sm:$0x1]
    %s183 = sadd.s32 %s175, 2
    %s184 = sld [smem:[#allocation4 + %s183]]
    %s185 = scalar_lea.vmem [#allocation5], %s184
    %v186 = vld [vmem:[%s185] sm:$0x1]
    %s187 = sadd.s32 %s175, 3
    %s188 = sld [smem:[#allocation4 + %s187]]
    %s189 = scalar_lea.vmem [#allocation5], %s188
    %v190 = vld [vmem:[%s189] sm:$0x1]
    %v191 = vadd.f32 %v178, %v182
    %v192 = vadd.f32 %v186, %v190
    %v193 = vadd.f32 %v191, %v192
    %194 = vst [vmem:[#allocation2 + $0x5] sm:$0x1] %v193
    %s195 = sadd.s32 %s69, 6
    %s196 = smul.u32 %s195, 128
    %s197 = sld [smem:[#allocation4 + %s196]]
    %s198 = scalar_lea.vmem [#allocation5], %s197
    %v199 = vld [vmem:[%s198] sm:$0x1]
    %s200 = sadd.s32 %s196, 1
    %s201 = sld [smem:[#allocation4 + %s200]]
    %s202 = scalar_lea.vmem [#allocation5], %s201
    %v203 = vld [vmem:[%s202] sm:$0x1]
    %s204 = sadd.s32 %s196, 2
    %s205 = sld [smem:[#allocation4 + %s204]]
    %s206 = scalar_lea.vmem [#allocation5], %s205
    %v207 = vld [vmem:[%s206] sm:$0x1]
    %s208 = sadd.s32 %s196, 3
    %s209 = sld [smem:[#allocation4 + %s208]]
    %s210 = scalar_lea.vmem [#allocation5], %s209
    %v211 = vld [vmem:[%s210] sm:$0x1]
    %v212 = vadd.f32 %v199, %v203
    %v213 = vadd.f32 %v207, %v211
    %v214 = vadd.f32 %v212, %v213
    %215 = vst [vmem:[#allocation2 + $0x6] sm:$0x1] %v214
    %s216 = sadd.s32 %s69, 7
    %s217 = smul.u32 %s216, 128
    %s218 = sld [smem:[#allocation4 + %s217]]
    %s219 = scalar_lea.vmem [#allocation5], %s218
    %v220 = vld [vmem:[%s219] sm:$0x1]
    %s221 = sadd.s32 %s217, 1
    %s222 = sld [smem:[#allocation4 + %s221]]
    %s223 = scalar_lea.vmem [#allocation5], %s222
    %v224 = vld [vmem:[%s223] sm:$0x1]
    %s225 = sadd.s32 %s217, 2
    %s226 = sld [smem:[#allocation4 + %s225]]
    %s227 = scalar_lea.vmem [#allocation5], %s226
    %v228 = vld [vmem:[%s227] sm:$0x1]
    %s229 = sadd.s32 %s217, 3
    %s230 = sld [smem:[#allocation4 + %s229]]
    %s231 = scalar_lea.vmem [#allocation5], %s230
    %v232 = vld [vmem:[%s231] sm:$0x1]
    %v233 = vadd.f32 %v220, %v224
    %v234 = vadd.f32 %v228, %v232
    %v235 = vadd.f32 %v233, %v234
    %236 = vst [vmem:[#allocation2 + $0x7] sm:$0x1] %v235
    %v237 = vld [vmem:[#allocation2] sm:$0xff]
    %v238 = vld [vmem:[#allocation8] sm:$0xff]
    %v239 = vld [vmem:[#allocation8 + $0x8] sm:$0xff]
    %v240 = vld [vmem:[#allocation8 + $0x10] sm:$0xff]
    %v241 = vld [vmem:[#allocation8 + $0x18] sm:$0xff]
    %v242 = vld [vmem:[#allocation8 + $0x20] sm:$0xff]
    %v243 = vld [vmem:[#allocation8 + $0x28] sm:$0xff]
    %v244 = vld [vmem:[#allocation8 + $0x30] sm:$0xff]
    %v245 = vld [vmem:[#allocation8 + $0x38] sm:$0xff]
    %v246 = vld [vmem:[#allocation8 + $0x40] sm:$0xff]
    %v247 = vld [vmem:[#allocation8 + $0x48] sm:$0xff]
    %v248 = vld [vmem:[#allocation8 + $0x50] sm:$0xff]
    %v249 = vld [vmem:[#allocation8 + $0x58] sm:$0xff]
    %v250 = vld [vmem:[#allocation8 + $0x60] sm:$0xff]
    %v251 = vld [vmem:[#allocation8 + $0x68] sm:$0xff]
    %v252 = vld [vmem:[#allocation8 + $0x70] sm:$0xff]
    %v253 = vld [vmem:[#allocation8 + $0x78] sm:$0xff]
    %v254 = vld [vmem:[%s3] sm:$0x1]
    %v256 = vlaneseq
    %v257 = vshrl.u32 %v256, 7
    %v258 = vsub.s32 0, %v257
    %v259 = vrot.slane %v254, %v258
    %261 = vmatprep.subr.mxu0 0.0
    %262 = vmatpush1.msra.mxu0 %v253
    %263 = vmatprep.subr.mxu0 0.0
    %264 = vmatpush1.msra.mxu0 %v252
    %265 = vmatprep.subr.mxu0 0.0
    %266 = vmatpush1.msra.mxu0 %v251
    %267 = vmatprep.subr.mxu0 0.0
    %268 = vmatpush1.msra.mxu0 %v250
    %269 = vmatprep.subr.mxu0 0.0
    %270 = vmatpush1.msra.mxu0 %v249
    %271 = vmatprep.subr.mxu0 0.0
    %272 = vmatpush1.msra.mxu0 %v248
    %273 = vmatprep.subr.mxu0 0.0
    %274 = vmatpush1.msra.mxu0 %v247
    %275 = vmatprep.subr.mxu0 0.0
    %276 = vmatpush1.msra.mxu0 %v246
    %277 = vmatprep.subr.mxu0 0.0
    %278 = vmatpush1.msra.mxu0 %v245
    %279 = vmatprep.subr.mxu0 0.0
    %280 = vmatpush1.msra.mxu0 %v244
    %281 = vmatprep.subr.mxu0 0.0
    %282 = vmatpush1.msra.mxu0 %v243
    %283 = vmatprep.subr.mxu0 0.0
    %284 = vmatpush1.msra.mxu0 %v242
    %285 = vmatprep.subr.mxu0 0.0
    %286 = vmatpush1.msra.mxu0 %v241
    %287 = vmatprep.subr.mxu0 0.0
    %288 = vmatpush1.msra.mxu0 %v240
    %289 = vmatprep.subr.mxu0 0.0
    %290 = vmatpush1.msra.mxu0 %v239
    %291 = vmatprep.subr.mxu0 0.0
    %292 = vmatpush1.msra.mxu0 %v238
    %293 = vmatprep.subr.mxu0 0.0
    %294 = vmatpush2.msra.mxu0 0.0
    %295 = vmatprep.subr.mxu0 0.0
    %296 = vmatpush2.msra.mxu0 0.0
    %297 = vmatprep.subr.mxu0 0.0
    %298 = vmatpush2.msra.mxu0 0.0
    %299 = vmatprep.subr.mxu0 0.0
    %300 = vmatpush2.msra.mxu0 0.0
    %301 = vmatprep.subr.mxu0 0.0
    %302 = vmatpush2.msra.mxu0 0.0
    %303 = vmatprep.subr.mxu0 0.0
    %304 = vmatpush2.msra.mxu0 0.0
    %305 = vmatprep.subr.mxu0 0.0
    %306 = vmatpush2.msra.mxu0 0.0
    %307 = vmatprep.subr.mxu0 0.0
    %308 = vmatpush2.msra.mxu0 0.0
    %309 = vmatprep.subr.mxu0 0.0
    %310 = vmatpush2.msra.mxu0 0.0
    %311 = vmatprep.subr.mxu0 0.0
    %312 = vmatpush2.msra.mxu0 0.0
    %313 = vmatprep.subr.mxu0 0.0
    %314 = vmatpush2.msra.mxu0 0.0
    %315 = vmatprep.subr.mxu0 0.0
    %316 = vmatpush2.msra.mxu0 0.0
    %317 = vmatprep.subr.mxu0 0.0
    %318 = vmatpush2.msra.mxu0 0.0
    %319 = vmatprep.subr.mxu0 0.0
    %320 = vmatpush2.msra.mxu0 0.0
    %321 = vmatprep.subr.mxu0 0.0
    %322 = vmatpush2.msra.mxu0 0.0
    %323 = vmatprep.subr.mxu0 0.0
    %324 = vmatpush2.msra.mxu0 0.0
    %325 = vmatprep.mubr.f32.mxu0 0.0
    %326 = vmatmul.mubr.f32.gmra.mxu0 %v237
    %v327 = vpop.f32.mrf.mxu0
    %v328 = vadd.f32 %v259, %v327
    %v329 = vpop.f32.mrf.mxu0
    %330 = vdwg.mxu0
    %v331 = vmax.f32 %v328, 0.0
    %v332 = vld [vmem:[#allocation10] sm:$0xff]
    %v333 = vld [vmem:[#allocation10 + $0x8] sm:$0xff]
    %v334 = vld [vmem:[#allocation10 + $0x10] sm:$0xff]
    %v335 = vld [vmem:[#allocation10 + $0x18] sm:$0xff]
    %v336 = vld [vmem:[#allocation10 + $0x20] sm:$0xff]
    %v337 = vld [vmem:[#allocation10 + $0x28] sm:$0xff]
    %v338 = vld [vmem:[#allocation10 + $0x30] sm:$0xff]
    %v339 = vld [vmem:[#allocation10 + $0x38] sm:$0xff]
    %v340 = vld [vmem:[#allocation10 + $0x40] sm:$0xff]
    %v341 = vld [vmem:[#allocation10 + $0x48] sm:$0xff]
    %v342 = vld [vmem:[#allocation10 + $0x50] sm:$0xff]
    %v343 = vld [vmem:[#allocation10 + $0x58] sm:$0xff]
    %v344 = vld [vmem:[#allocation10 + $0x60] sm:$0xff]
    %v345 = vld [vmem:[#allocation10 + $0x68] sm:$0xff]
    %v346 = vld [vmem:[#allocation10 + $0x70] sm:$0xff]
    %v347 = vld [vmem:[#allocation10 + $0x78] sm:$0xff]
    %v348 = vld [vmem:[%s5] sm:$0x1]
    %v350 = vlaneseq
    %v351 = vshrl.u32 %v350, 7
    %v352 = vsub.s32 0, %v351
    %v353 = vrot.slane %v348, %v352
    %355 = vmatprep.subr.mxu0 0.0
    %356 = vmatpush1.msra.mxu0 %v347
    %357 = vmatprep.subr.mxu0 0.0
    %358 = vmatpush1.msra.mxu0 %v346
    %359 = vmatprep.subr.mxu0 0.0
    %360 = vmatpush1.msra.mxu0 %v345
    %361 = vmatprep.subr.mxu0 0.0
    %362 = vmatpush1.msra.mxu0 %v344
    %363 = vmatprep.subr.mxu0 0.0
    %364 = vmatpush1.msra.mxu0 %v343
    %365 = vmatprep.subr.mxu0 0.0
    %366 = vmatpush1.msra.mxu0 %v342
    %367 = vmatprep.subr.mxu0 0.0
    %368 = vmatpush1.msra.mxu0 %v341
    %369 = vmatprep.subr.mxu0 0.0
    %370 = vmatpush1.msra.mxu0 %v340
    %371 = vmatprep.subr.mxu0 0.0
    %372 = vmatpush1.msra.mxu0 %v339
    %373 = vmatprep.subr.mxu0 0.0
    %374 = vmatpush1.msra.mxu0 %v338
    %375 = vmatprep.subr.mxu0 0.0
    %376 = vmatpush1.msra.mxu0 %v337
    %377 = vmatprep.subr.mxu0 0.0
    %378 = vmatpush1.msra.mxu0 %v336
    %379 = vmatprep.subr.mxu0 0.0
    %380 = vmatpush1.msra.mxu0 %v335
    %381 = vmatprep.subr.mxu0 0.0
    %382 = vmatpush1.msra.mxu0 %v334
    %383 = vmatprep.subr.mxu0 0.0
    %384 = vmatpush1.msra.mxu0 %v333
    %385 = vmatprep.subr.mxu0 0.0
    %386 = vmatpush1.msra.mxu0 %v332
    %387 = vmatprep.subr.mxu0 0.0
    %388 = vmatpush2.msra.mxu0 0.0
    %389 = vmatprep.subr.mxu0 0.0
    %390 = vmatpush2.msra.mxu0 0.0
    %391 = vmatprep.subr.mxu0 0.0
    %392 = vmatpush2.msra.mxu0 0.0
    %393 = vmatprep.subr.mxu0 0.0
    %394 = vmatpush2.msra.mxu0 0.0
    %395 = vmatprep.subr.mxu0 0.0
    %396 = vmatpush2.msra.mxu0 0.0
    %397 = vmatprep.subr.mxu0 0.0
    %398 = vmatpush2.msra.mxu0 0.0
    %399 = vmatprep.subr.mxu0 0.0
    %400 = vmatpush2.msra.mxu0 0.0
    %401 = vmatprep.subr.mxu0 0.0
    %402 = vmatpush2.msra.mxu0 0.0
    %403 = vmatprep.subr.mxu0 0.0
    %404 = vmatpush2.msra.mxu0 0.0
    %405 = vmatprep.subr.mxu0 0.0
    %406 = vmatpush2.msra.mxu0 0.0
    %407 = vmatprep.subr.mxu0 0.0
    %408 = vmatpush2.msra.mxu0 0.0
    %409 = vmatprep.subr.mxu0 0.0
    %410 = vmatpush2.msra.mxu0 0.0
    %411 = vmatprep.subr.mxu0 0.0
    %412 = vmatpush2.msra.mxu0 0.0
    %413 = vmatprep.subr.mxu0 0.0
    %414 = vmatpush2.msra.mxu0 0.0
    %415 = vmatprep.subr.mxu0 0.0
    %416 = vmatpush2.msra.mxu0 0.0
    %417 = vmatprep.subr.mxu0 0.0
    %418 = vmatpush2.msra.mxu0 0.0
    %419 = vmatprep.mubr.f32.mxu0 0.0
    %420 = vmatmul.mubr.f32.gmra.mxu0 %v331
    %v421 = vpop.f32.mrf.mxu0
    %v422 = vadd.f32 %v353, %v421
    %v423 = vpop.f32.mrf.mxu0
    %424 = vdwg.mxu0
    %v425 = vlaneseq
    %v426 = vand.u32 %v425, 127
    %vm427 = vcmp.lt.s32.totalorder %v426, 81
    %v428 = vsel %vm427, %v422, -1e+30
    %429 = vmax.xlane.f32.xlu0 %v428
    %v430 = vpop.xlane.xlu0 %429
    %v431 = vsub.f32 %v428, %v430
    %v432 = vmul.f32 %v431, 1.442695
    %v433 = vpow.pop %v432
    %434 = vadd.xlane.f32.xlu0 %v433
    %v435 = vpop.xlane.xlu0 %434
    %v436 = vlog2.pop %v435
    %v437 = vmul.f32 %v436, 0.6931472
    %v438 = vsub.f32 %v431, %v437
    %439 = vst [vmem:[#allocation11] sm:$0xff] %v438
    // Predicated region
    $region34: #{tpu_custom_call.1} parent=1 // pred_check
      _
    $region35: #{tpu_custom_call.1} parent=1 // pred_check_branch
      %441 = sbr.rel (0) target = $region37
    $region36: #{tpu_custom_call.1} parent=1 // pred_region
      %s443 = ssub.s32 128, 128
      %444 = vsyncadd [#allocation7], %s443
      %s446 = sshll.u32 [#allocation11], 4
      %s447 = int_to_ptr.vmem [resolvable:$true] %s446
      %449 = dma.vmem_to_hbm [thread:$0]  %s447, 128, %s6, [#allocation7]
    $region37: #{tpu_custom_call.1} parent=1 // pred_fallthru
      _
    // Predicated region
    $region38: #{tpu_custom_call.1} parent=1 // pred_check
      _
    $region39: #{tpu_custom_call.1} parent=1 // pred_check_branch
      %451 = sbr.rel (0) target = $region41
    $region40: #{tpu_custom_call.1} parent=1 // pred_region
      %452 = dma.done [#allocation7], 128
    $region41: #{tpu_custom_call.1} parent=1 // pred_fallthru
      _
    %453 = vsyncpa [#allocation6], 1
    %454 = vsyncpa [#allocation9], 1
    %455 = vsyncpa [#allocation7], 1

</llo_original>
